<compile_context>
chip_gen: v6e
topology: v6e:2x2x1
jax: 0.10.0
libtpu: 0.0.40
codegen_flags: <defaults>
</compile_context>

<pallas_src>
import jax
import jax.numpy as jnp
from jax.experimental import pallas as pl
from jax.experimental.pallas import tpu as pltpu


def wide_and_deep_kernel(idx_ref, emb_blk_ref, w1_ref, w2_ref, packed_ref, o_ref):
    """Fused gather + wide-sum + deep-MLP + sigmoid, batch on lanes.

    idx_ref:     (F, tb)          int32 global table indices (offsets added)
    emb_blk_ref: (d_in + 1, total) block-diagonal embedding table (transposed),
                                   last row = wide weight vector
    w1_ref:      (h1, d_in)       W1^T
    w2_ref:      (h2, h1)         W2^T
    packed_ref:  (h1+2*h2+1, 1)   [b1; b2; w3; b3 + wide_bias]
    o_ref:       (1, tb)          sigmoid output, lane-dense
    """
    num_fields, tb = idx_ref.shape
    d_in_p1, total = emb_blk_ref.shape
    d_in = d_in_p1 - 1
    h1 = w1_ref.shape[0]
    h2 = w2_ref.shape[0]

    # --- one multi-hot built once: F compares + adds (no per-field one-hots) --
    vocab = jax.lax.broadcasted_iota(jnp.int32, (total, tb), 0)
    multi_hot = jnp.zeros((total, tb), jnp.float32)
    for f in range(num_fields):                       # static, small F
        multi_hot = multi_hot + (vocab == idx_ref[f:f + 1, :]).astype(jnp.float32)

    # --- single block-diagonal MXU gather ------------------------------------
    # rows [0, d_in): exact per-field embedding row copies (transposed x)
    # row d_in:       sum of the selected wide weights
    x_plus = jnp.dot(emb_blk_ref[...], multi_hot,
                     preferred_element_type=jnp.float32)          # (d_in+1, tb)
    x_t = x_plus[:d_in, :]                                        # (d_in, tb)
    out_lin = x_plus[d_in:, :]                                    # (1, tb)

    # --- unpack the small packed column --------------------------------------
    packed = packed_ref[...]
    b1 = packed[:h1, :]                                           # (h1, 1)
    b2 = packed[h1:h1 + h2, :]                                    # (h2, 1)
    w3 = packed[h1 + h2:h1 + 2 * h2, :]                           # (h2, 1)
    bias = packed[h1 + 2 * h2:, :]                                # (1, 1)

    # --- deep MLP (transposed) ------------------------------------------------
    a1 = jnp.maximum(
        jnp.dot(w1_ref[...], x_t, preferred_element_type=jnp.float32) + b1, 0.0)
    a2 = jnp.maximum(
        jnp.dot(w2_ref[...], a1, preferred_element_type=jnp.float32) + b2, 0.0)
    # final 1-wide layer on VPU/XLU instead of a 1-column MXU matmul
    out_mlp = jnp.sum(a2 * w3, axis=0, keepdims=True)             # (1, tb)

    o_ref[...] = jax.nn.sigmoid(out_mlp + out_lin + bias)


def init_params(key, feature_dims, embed_size, hidden_nbs):
    total = int(sum(feature_dims))
    d_in = len(feature_dims) * embed_size
    dims = [d_in] + list(hidden_nbs)      # e.g. [32, 32, 16, 1]
    ks = jax.random.split(key, 8)
    params = {
        "embed_table": jax.random.normal(ks[0], (total, embed_size), jnp.float32) * 0.1,
        "wide_table":  jax.random.normal(ks[1], (total, 1), jnp.float32) * 0.1,
        "wide_bias":   jnp.zeros((1, 1), jnp.float32),
        "w1": jax.random.normal(ks[2], (dims[0], dims[1]), jnp.float32) * 0.1,
        "b1": jnp.zeros((1, dims[1]), jnp.float32),
        "w2": jax.random.normal(ks[3], (dims[1], dims[2]), jnp.float32) * 0.1,
        "b2": jnp.zeros((1, dims[2]), jnp.float32),
        "w3": jax.random.normal(ks[4], (dims[2], dims[3]), jnp.float32) * 0.1,
        "b3": jnp.zeros((1, dims[3]), jnp.float32),
    }
    return params


def _choose_tb(B, tb_max=1024):
    """Largest lane-aligned batch tile <= tb_max that still leaves >= 2 grid
    steps (so both v7x TensorCores get work via 'parallel' semantics)."""
    b128 = ((B + 127) // 128) * 128
    if b128 <= 128:
        return 128
    half = ((b128 // 2 + 127) // 128) * 128
    return max(128, min(tb_max, half))


def wide_and_deep_forward(data, params, feature_dims, embed_size, tb=None):
    B, F = data.shape
    E = embed_size
    total = int(sum(feature_dims))
    d_in = F * E
    h1 = params["w1"].shape[1]
    h2 = params["w2"].shape[1]

    # --- batch tiling --------------------------------------------------------
    if tb is None:
        tb = _choose_tb(B)
    n_tiles = pl.cdiv(B, tb)
    Bp = n_tiles * tb

    # --- glue: global table indices, padded to the tile multiple -------------
    offs = [0]
    for v in feature_dims[:-1]:
        offs.append(offs[-1] + int(v))
    offsets = jnp.asarray(offs, jnp.int32)
    idx = data.astype(jnp.int32) + offsets[None, :]              # (B, F)
    if Bp != B:
        idx = jnp.pad(idx, ((0, Bp - B), (0, 0)))                # padded rows discarded
    idx_t = idx.T                                                # (F, Bp)

    # --- one-time weight layout plumbing (exact, static slices) --------------
    # Block-diagonal table: rows [f*E, (f+1)*E) x field-f vocab columns hold
    # that field's embedding rows (transposed); last row is the wide column.
    emb_blk = jnp.zeros((d_in + 1, total), jnp.float32)
    for f in range(F):
        off = offs[f]
        v = int(feature_dims[f])
        emb_blk = emb_blk.at[f * E:(f + 1) * E, off:off + v].set(
            params["embed_table"][off:off + v, :].T)
    emb_blk = emb_blk.at[d_in, :].set(params["wide_table"][:, 0])

    w1_t = params["w1"].T                                        # (h1, d_in)
    w2_t = params["w2"].T                                        # (h2, h1)
    packed = jnp.concatenate(
        [params["b1"].T,                                         # (h1, 1)
         params["b2"].T,                                         # (h2, 1)
         params["w3"],                                           # (h2, 1)
         (params["b3"] + params["wide_bias"]).reshape(1, 1)],    # (1, 1)
        axis=0)                                                  # (h1+2*h2+1, 1)

    # --- cost hint & compiler params -----------------------------------------
    flops_per_tile = 2 * tb * ((d_in + 1) * total + h1 * d_in + h2 * h1 + h2)
    cost = pl.CostEstimate(
        flops=n_tiles * flops_per_tile,
        transcendentals=n_tiles * tb,
        bytes_accessed=4 * (F * Bp + (d_in + 1) * total + h1 * d_in + h2 * h1
                            + (h1 + 2 * h2 + 1) + Bp))

    out = pl.pallas_call(
        wide_and_deep_kernel,
        out_shape=jax.ShapeDtypeStruct((1, Bp), jnp.float32),
        grid=(n_tiles,),
        in_specs=[
            pl.BlockSpec((F, tb), lambda i: (0, i)),              # idx (per tile)
            pl.BlockSpec((d_in + 1, total), lambda i: (0, 0)),    # block-diag table
            pl.BlockSpec((h1, d_in), lambda i: (0, 0)),           # W1^T
            pl.BlockSpec((h2, h1), lambda i: (0, 0)),             # W2^T
            pl.BlockSpec((h1 + 2 * h2 + 1, 1), lambda i: (0, 0)), # packed biases/w3
        ],
        out_specs=pl.BlockSpec((1, tb), lambda i: (0, i)),        # lane-dense output
        compiler_params=pltpu.CompilerParams(
            dimension_semantics=("parallel",),
            vmem_limit_bytes=32 * 1024 * 1024),
        cost_estimate=cost,
    )(idx_t, emb_blk, w1_t, w2_t, packed)

    # matches torch.sigmoid(...).squeeze(1)
    return out[0, :B]


def reference_forward(data, params, feature_dims, embed_size):
    B, F = data.shape
    offsets = jnp.concatenate(
        [jnp.zeros((1,), jnp.int32),
         jnp.cumsum(jnp.asarray(feature_dims, jnp.int32))[:-1]])
    idx = data.astype(jnp.int32) + offsets[None, :]
    x = jnp.take(params["embed_table"], idx, axis=0).reshape(B, -1)
    out_linear = jnp.take(params["wide_table"][:, 0], idx, axis=0).sum(
        axis=-1, keepdims=True) + params["wide_bias"]
    h1 = jax.nn.relu(x @ params["w1"] + params["b1"])
    h2 = jax.nn.relu(h1 @ params["w2"] + params["b2"])
    out_mlp = h2 @ params["w3"] + params["b3"]
    return jax.nn.sigmoid(out_linear + out_mlp)[:, 0]


if __name__ == "__main__":
    feature_dims = (8, 6, 5, 7)          # 4 categorical fields, total vocab = 26
    embed_size = 8                        # embed_out_dim = 4 * 8 = 32
    hidden_nbs = [32, 16, 1]              # MLP: 32 -> 32 -> 16 -> 1 (dropout=0 / eval)
    batch = 300                           # not a tile multiple: exercises padding
    # auto tb -> 256 (fills 256-wide MXU on v6e/v7x), grid = 2 parallel steps

    key = jax.random.PRNGKey(0)
    pkey, dkey = jax.random.split(key)
    params = init_params(pkey, feature_dims, embed_size, hidden_nbs)

    # deterministic synthetic categorical data: (batch, num_fields) int32
    maxvals = jnp.asarray(feature_dims, jnp.int32)
    data = (jax.random.randint(dkey, (batch, len(feature_dims)), 0, 10 ** 6)
            % maxvals[None, :]).astype(jnp.int32)

    out = wide_and_deep_forward(data, params, feature_dims, embed_size)
    out = jax.block_until_ready(out)

    ref = reference_forward(data, params, feature_dims, embed_size)
    assert out.shape == (batch,)
    assert jnp.allclose(out, ref, atol=1e-5, rtol=1e-5), (out, ref)
    print("KERNEL_OK")
</pallas_src>

<mosaic_0001>
module attributes {stable_mosaic.version = 11 : i64} {
  func.func @wide_and_deep_kernel(%arg0: i32, %arg1: memref<4x256xi32, #tpu.memory_space<vmem>>, %arg2: memref<33x26xf32, #tpu.memory_space<vmem>>, %arg3: memref<32x32xf32, #tpu.memory_space<vmem>>, %arg4: memref<16x32xf32, #tpu.memory_space<vmem>>, %arg5: memref<65x1xf32, #tpu.memory_space<vmem>>, %arg6: memref<1x256xf32, #tpu.memory_space<vmem>>) attributes {dimension_semantics = [#tpu.dimension_semantics<parallel>], iteration_bounds = array<i64: 2>, scalar_prefetch = 0 : i64, scratch_operands = 0 : i64, tpu.core_type = #tpu.core_type<tc>, window_params = [{transform_indices = @transform_0, window_bounds = array<i64: 4, 256>}, {pipeline_mode = #tpu.pipeline_mode<synchronous>, transform_indices = @transform_1, window_bounds = array<i64: 33, 26>}, {pipeline_mode = #tpu.pipeline_mode<synchronous>, transform_indices = @transform_2, window_bounds = array<i64: 32, 32>}, {pipeline_mode = #tpu.pipeline_mode<synchronous>, transform_indices = @transform_3, window_bounds = array<i64: 16, 32>}, {pipeline_mode = #tpu.pipeline_mode<synchronous>, transform_indices = @transform_4, window_bounds = array<i64: 65, 1>}, {transform_indices = @transform_5, window_bounds = array<i64: 1, 256>}]} {
    %0 = tpu.iota {dimensions = array<i32: 0>} : vector<26x256xi32>
    %cst = arith.constant 0.000000e+00 : f32
    %1 = vector.broadcast %cst : f32 to vector<26x256xf32>
    %c0 = arith.constant 0 : index
    %c0_0 = arith.constant 0 : index
    %2 = vector.load %arg1[%c0, %c0_0] : memref<4x256xi32, #tpu.memory_space<vmem>>, vector<1x256xi32>
    %3 = vector.broadcast %2 : vector<1x256xi32> to vector<26x256xi32>
    %4 = arith.cmpi eq, %0, %3 : vector<26x256xi32>
    %5 = arith.extui %4 : vector<26x256xi1> to vector<26x256xi32>
    %6 = arith.sitofp %5 : vector<26x256xi32> to vector<26x256xf32>
    %7 = arith.addf %1, %6 : vector<26x256xf32>
    %c1 = arith.constant 1 : index
    %c0_1 = arith.constant 0 : index
    %8 = vector.load %arg1[%c1, %c0_1] : memref<4x256xi32, #tpu.memory_space<vmem>>, vector<1x256xi32>
    %9 = vector.broadcast %8 : vector<1x256xi32> to vector<26x256xi32>
    %10 = arith.cmpi eq, %0, %9 : vector<26x256xi32>
    %11 = arith.extui %10 : vector<26x256xi1> to vector<26x256xi32>
    %12 = arith.sitofp %11 : vector<26x256xi32> to vector<26x256xf32>
    %13 = arith.addf %7, %12 : vector<26x256xf32>
    %c2 = arith.constant 2 : index
    %c0_2 = arith.constant 0 : index
    %14 = vector.load %arg1[%c2, %c0_2] : memref<4x256xi32, #tpu.memory_space<vmem>>, vector<1x256xi32>
    %15 = vector.broadcast %14 : vector<1x256xi32> to vector<26x256xi32>
    %16 = arith.cmpi eq, %0, %15 : vector<26x256xi32>
    %17 = arith.extui %16 : vector<26x256xi1> to vector<26x256xi32>
    %18 = arith.sitofp %17 : vector<26x256xi32> to vector<26x256xf32>
    %19 = arith.addf %13, %18 : vector<26x256xf32>
    %c3 = arith.constant 3 : index
    %c0_3 = arith.constant 0 : index
    %20 = vector.load %arg1[%c3, %c0_3] : memref<4x256xi32, #tpu.memory_space<vmem>>, vector<1x256xi32>
    %21 = vector.broadcast %20 : vector<1x256xi32> to vector<26x256xi32>
    %22 = arith.cmpi eq, %0, %21 : vector<26x256xi32>
    %23 = arith.extui %22 : vector<26x256xi1> to vector<26x256xi32>
    %24 = arith.sitofp %23 : vector<26x256xi32> to vector<26x256xf32>
    %25 = arith.addf %19, %24 : vector<26x256xf32>
    %c0_4 = arith.constant 0 : index
    %c0_5 = arith.constant 0 : index
    %26 = vector.load %arg2[%c0_4, %c0_5] : memref<33x26xf32, #tpu.memory_space<vmem>>, vector<33x26xf32>
    %cst_6 = arith.constant dense<0.000000e+00> : vector<33x256xf32>
    %27 = tpu.matmul %26, %25, %cst_6 {dimension_numbers = #tpu.dot_dimension_numbers<[1], [0], [0], [1], [0, 0, 1, 1], [], []>} : vector<33x26xf32>, vector<26x256xf32>, vector<33x256xf32> -> vector<33x256xf32>
    %28 = vector.extract_strided_slice %27 {offsets = [0, 0], sizes = [32, 256], strides = [1, 1]} : vector<33x256xf32> to vector<32x256xf32>
    %29 = vector.extract_strided_slice %27 {offsets = [32, 0], sizes = [1, 256], strides = [1, 1]} : vector<33x256xf32> to vector<1x256xf32>
    %c0_7 = arith.constant 0 : index
    %c0_8 = arith.constant 0 : index
    %30 = vector.load %arg5[%c0_7, %c0_8] : memref<65x1xf32, #tpu.memory_space<vmem>>, vector<65x1xf32>
    %31 = vector.extract_strided_slice %30 {offsets = [0, 0], sizes = [32, 1], strides = [1, 1]} : vector<65x1xf32> to vector<32x1xf32>
    %32 = vector.extract_strided_slice %30 {offsets = [32, 0], sizes = [16, 1], strides = [1, 1]} : vector<65x1xf32> to vector<16x1xf32>
    %33 = vector.extract_strided_slice %30 {offsets = [48, 0], sizes = [16, 1], strides = [1, 1]} : vector<65x1xf32> to vector<16x1xf32>
    %34 = vector.extract_strided_slice %30 {offsets = [64, 0], sizes = [1, 1], strides = [1, 1]} : vector<65x1xf32> to vector<1x1xf32>
    %c0_9 = arith.constant 0 : index
    %c0_10 = arith.constant 0 : index
    %35 = vector.load %arg3[%c0_9, %c0_10] : memref<32x32xf32, #tpu.memory_space<vmem>>, vector<32x32xf32>
    %cst_11 = arith.constant dense<0.000000e+00> : vector<32x256xf32>
    %36 = tpu.matmul %35, %28, %cst_11 {dimension_numbers = #tpu.dot_dimension_numbers<[1], [0], [0], [1], [0, 0, 1, 1], [], []>} : vector<32x32xf32>, vector<32x256xf32>, vector<32x256xf32> -> vector<32x256xf32>
    %37 = vector.broadcast %31 : vector<32x1xf32> to vector<32x256xf32>
    %38 = arith.addf %36, %37 : vector<32x256xf32>
    %cst_12 = arith.constant 0.000000e+00 : f32
    %39 = vector.broadcast %cst_12 : f32 to vector<32x256xf32>
    %40 = arith.maximumf %38, %39 : vector<32x256xf32>
    %c0_13 = arith.constant 0 : index
    %c0_14 = arith.constant 0 : index
    %41 = vector.load %arg4[%c0_13, %c0_14] : memref<16x32xf32, #tpu.memory_space<vmem>>, vector<16x32xf32>
    %cst_15 = arith.constant dense<0.000000e+00> : vector<16x256xf32>
    %42 = tpu.matmul %41, %40, %cst_15 {dimension_numbers = #tpu.dot_dimension_numbers<[1], [0], [0], [1], [0, 0, 1, 1], [], []>} : vector<16x32xf32>, vector<32x256xf32>, vector<16x256xf32> -> vector<16x256xf32>
    %43 = vector.broadcast %32 : vector<16x1xf32> to vector<16x256xf32>
    %44 = arith.addf %42, %43 : vector<16x256xf32>
    %cst_16 = arith.constant 0.000000e+00 : f32
    %45 = vector.broadcast %cst_16 : f32 to vector<16x256xf32>
    %46 = arith.maximumf %44, %45 : vector<16x256xf32>
    %47 = vector.broadcast %33 : vector<16x1xf32> to vector<16x256xf32>
    %48 = arith.mulf %46, %47 : vector<16x256xf32>
    %cst_17 = arith.constant dense<0.000000e+00> : vector<256xf32>
    %49 = vector.multi_reduction <add>, %48, %cst_17 [0] : vector<16x256xf32> to vector<256xf32>
    %50 = vector.shape_cast %49 : vector<256xf32> to vector<1x256xf32>
    %51 = arith.addf %50, %29 : vector<1x256xf32>
    %52 = vector.broadcast %34 : vector<1x1xf32> to vector<1x256xf32>
    %53 = arith.addf %51, %52 : vector<1x256xf32>
    %54 = arith.negf %53 : vector<1x256xf32>
    %55 = math.exp %54 : vector<1x256xf32>
    %cst_18 = arith.constant 1.000000e+00 : f32
    %56 = vector.broadcast %cst_18 : f32 to vector<1x256xf32>
    %57 = arith.addf %56, %55 : vector<1x256xf32>
    %58 = arith.divf %56, %57 : vector<1x256xf32>
    %c0_19 = arith.constant 0 : index
    %c0_20 = arith.constant 0 : index
    %59 = vector.load %arg6[%c0_19, %c0_20] : memref<1x256xf32, #tpu.memory_space<vmem>>, vector<1x256xf32>
    tpu.vector_store %arg6[%c0_19, %c0_20], %58 {strides = array<i32>} : memref<1x256xf32, #tpu.memory_space<vmem>>, vector<1x256xf32>,
    return
  }
  func.func @transform_0(%arg0: i32) -> (i32, i32) {
    %c0_i32 = arith.constant 0 : i32
    %c0_i32_0 = arith.constant 0 : i32
    return %c0_i32, %arg0 : i32, i32
  }
  func.func @transform_1(%arg0: i32) -> (i32, i32) {
    %c0_i32 = arith.constant 0 : i32
    %c0_i32_0 = arith.constant 0 : i32
    %c0_i32_1 = arith.constant 0 : i32
    return %c0_i32, %c0_i32_0 : i32, i32
  }
  func.func @transform_2(%arg0: i32) -> (i32, i32) {
    %c0_i32 = arith.constant 0 : i32
    %c0_i32_0 = arith.constant 0 : i32
    %c0_i32_1 = arith.constant 0 : i32
    return %c0_i32, %c0_i32_0 : i32, i32
  }
  func.func @transform_3(%arg0: i32) -> (i32, i32) {
    %c0_i32 = arith.constant 0 : i32
    %c0_i32_0 = arith.constant 0 : i32
    %c0_i32_1 = arith.constant 0 : i32
    return %c0_i32, %c0_i32_0 : i32, i32
  }
  func.func @transform_4(%arg0: i32) -> (i32, i32) {
    %c0_i32 = arith.constant 0 : i32
    %c0_i32_0 = arith.constant 0 : i32
    %c0_i32_1 = arith.constant 0 : i32
    return %c0_i32, %c0_i32_0 : i32, i32
  }
  func.func @transform_5(%arg0: i32) -> (i32, i32) {
    %c0_i32 = arith.constant 0 : i32
    %c0_i32_0 = arith.constant 0 : i32
    return %c0_i32, %arg0 : i32, i32
  }
}

</mosaic_0001>

<llo_original>
// kernel: tpu_custom_call.1
$region0: #{tpu_custom_call.1}
  #allocation0 [shape = 'u32[]', space=smem, size = 0x4, offset = 0x4, fixed_abs, tag = 'smem constant byte address 0x4 - core index']
  #allocation1 [shape = 'u32[144,128]{1,0:T(1,128)}', space=vmem, size = 0x12000, scoped, tag = 'internal scratch']
  %s0 = inlined_call_operand.vmem [shape: s32[4,512], index: 0, kind: input, shape index: {}]
  %s1 = inlined_call_operand.vmem [shape: f32[33,26], index: 1, kind: input, shape index: {}]
  %s2 = inlined_call_operand.vmem [shape: f32[32,32], index: 2, kind: input, shape index: {}]
  %s3 = inlined_call_operand.vmem [shape: f32[16,32], index: 3, kind: input, shape index: {}]
  %s4 = inlined_call_operand.vmem [shape: f32[65,1], index: 4, kind: input, shape index: {}]
  %s5 = inlined_call_operand.hbm [shape: f32[1,512], index: 5, kind: output, shape index: {}]
  %s6 = sld [smem:[#allocation0]]
  $region53: #{tpu_custom_call.1} parent=0
    _
  %s8 = ssub.s32 1, %s6
  %s9 = scalar_select 0, %s8, %s6
  $region1: #{tpu_custom_call.1} parent=0
    #allocation2 [shape = 'u8[2048]{0}', space=vmem, size = 0x800, scoped, tag = 'output window, operand 0']
    #allocation3 [shape = 's32[2]{0}', space=sflag, size = 0x8, scoped, tag = 'scoped memory for tpu_custom_call.1']
    %10 = vsyncpa [#allocation3], 0
    %s11 = scalar_lea.sflag [#allocation3], 1
    %12 = vsyncpa %s11, 0
    loop: start=0, step=1, limit=4
    $region2: #{tpu_custom_call.1} parent=1 // loop_pre_header
      _
    $region3: #{tpu_custom_call.1} parent=1 // loop_header
      %s14 = sphi 0, %s18
      %p15 = scmp.ge.s32.totalorder %s14, 4
      %s24 = sphi 0, %s26
      %s27 = sphi 0, %s24
      %s28 = sphi 0, %s27
      %s44 = sphi 0, %s28
      %s48 = sphi 0, %s48
      %s50 = sphi 0, %s48
      %s51 = sphi 0, %s50
      %s65 = sphi 0, %s51
      %s69 = sphi 0, %s69
      %s71 = sphi 0, %s69
      %s72 = sphi 0, %s71
      %s86 = sphi 0, %s72
      %s90 = sphi 0, %s90
      %s92 = sphi 0, %s90
      %s93 = sphi 0, %s92
      %s107 = sphi 0, %s93
      %s111 = sphi 0, %s111
      %s113 = sphi 0, %s111
      %s114 = sphi 0, %s113
      %s128 = sphi 0, %s114
      %s134 = sphi 0, %s136
      %s137 = sphi 0, %s134
      %s138 = sphi 0, %s137
      %s154 = sphi 0, %s138
    $region4: #{tpu_custom_call.1} parent=1 // loop_header_branch
      %17 = sbr.rel (%p15) target = $region8
    $region5: #{tpu_custom_call.1} parent=1 // loop_body
      %s19 = ssub.s32 %s14, 1
      %s20 = ssub.s32 %s14, 2
      %s21 = sadd.s32 %s14, 1
      %s22 = ssub.s32 %s14, %s21
      %p23 = scmp.eq.s32.totalorder %s22, 0
      %s25 = sadd.s32 %s24, 1
      %s26 = scalar_select %p23, %s24, %s25
      %p29 = pneg %p23
      %p30 = scmp.eq.s32.totalorder %s14, 1
      %p31 = por %p29, %p30
      %p32 = scmp.ne.s32.totalorder %s24, %s27
      %p33 = scmp.eq.s32.totalorder %s14, 0
      %p34 = por %p32, %p33
      %p35 = scmp.ne.s32.totalorder %s24, %s27
      %p36 = scmp.eq.s32.totalorder %s19, 1
      %p37 = por %p35, %p36
      %p38 = scmp.ne.s32.totalorder %s27, %s28
      %p39 = scmp.eq.s32.totalorder %s19, 0
      %p40 = por %p38, %p39
      %p41 = scmp.ne.s32.totalorder %s27, %s28
      %p42 = scmp.eq.s32.totalorder %s20, 1
      %p43 = por %p41, %p42
      %p45 = scmp.ne.s32.totalorder %s28, %s44
      %p46 = scmp.eq.s32.totalorder %s20, 0
      %p47 = por %p45, %p46
      %s49 = sadd.s32 %s48, 1
      %p52 = scmp.eq.s32.totalorder %s14, 1
      %p53 = scmp.ne.s32.totalorder %s48, %s50
      %p54 = scmp.eq.s32.totalorder %s14, 0
      %p55 = por %p53, %p54
      %p56 = scmp.ne.s32.totalorder %s48, %s50
      %p57 = scmp.eq.s32.totalorder %s19, 1
      %p58 = por %p56, %p57
      %p59 = scmp.ne.s32.totalorder %s50, %s51
      %p60 = scmp.eq.s32.totalorder %s19, 0
      %p61 = por %p59, %p60
      %p62 = scmp.ne.s32.totalorder %s50, %s51
      %p63 = scmp.eq.s32.totalorder %s20, 1
      %p64 = por %p62, %p63
      %p66 = scmp.ne.s32.totalorder %s51, %s65
      %p67 = scmp.eq.s32.totalorder %s20, 0
      %p68 = por %p66, %p67
      %s70 = sadd.s32 %s69, 1
      %p73 = scmp.eq.s32.totalorder %s14, 1
      %p74 = scmp.ne.s32.totalorder %s69, %s71
      %p75 = scmp.eq.s32.totalorder %s14, 0
      %p76 = por %p74, %p75
      %p77 = scmp.ne.s32.totalorder %s69, %s71
      %p78 = scmp.eq.s32.totalorder %s19, 1
      %p79 = por %p77, %p78
      %p80 = scmp.ne.s32.totalorder %s71, %s72
      %p81 = scmp.eq.s32.totalorder %s19, 0
      %p82 = por %p80, %p81
      %p83 = scmp.ne.s32.totalorder %s71, %s72
      %p84 = scmp.eq.s32.totalorder %s20, 1
      %p85 = por %p83, %p84
      %p87 = scmp.ne.s32.totalorder %s72, %s86
      %p88 = scmp.eq.s32.totalorder %s20, 0
      %p89 = por %p87, %p88
      %s91 = sadd.s32 %s90, 1
      %p94 = scmp.eq.s32.totalorder %s14, 1
      %p95 = scmp.ne.s32.totalorder %s90, %s92
      %p96 = scmp.eq.s32.totalorder %s14, 0
      %p97 = por %p95, %p96
      %p98 = scmp.ne.s32.totalorder %s90, %s92
      %p99 = scmp.eq.s32.totalorder %s19, 1
      %p100 = por %p98, %p99
      %p101 = scmp.ne.s32.totalorder %s92, %s93
      %p102 = scmp.eq.s32.totalorder %s19, 0
      %p103 = por %p101, %p102
      %p104 = scmp.ne.s32.totalorder %s92, %s93
      %p105 = scmp.eq.s32.totalorder %s20, 1
      %p106 = por %p104, %p105
      %p108 = scmp.ne.s32.totalorder %s93, %s107
      %p109 = scmp.eq.s32.totalorder %s20, 0
      %p110 = por %p108, %p109
      %s112 = sadd.s32 %s111, 1
      %p115 = scmp.eq.s32.totalorder %s14, 1
      %p116 = scmp.ne.s32.totalorder %s111, %s113
      %p117 = scmp.eq.s32.totalorder %s14, 0
      %p118 = por %p116, %p117
      %p119 = scmp.ne.s32.totalorder %s111, %s113
      %p120 = scmp.eq.s32.totalorder %s19, 1
      %p121 = por %p119, %p120
      %p122 = scmp.ne.s32.totalorder %s113, %s114
      %p123 = scmp.eq.s32.totalorder %s19, 0
      %p124 = por %p122, %p123
      %p125 = scmp.ne.s32.totalorder %s113, %s114
      %p126 = scmp.eq.s32.totalorder %s20, 1
      %p127 = por %p125, %p126
      %p129 = scmp.ne.s32.totalorder %s114, %s128
      %p130 = scmp.eq.s32.totalorder %s20, 0
      %p131 = por %p129, %p130
      %s132 = ssub.s32 %s14, %s21
      %p133 = scmp.eq.s32.totalorder %s132, 0
      %s135 = sadd.s32 %s134, 1
      %s136 = scalar_select %p133, %s134, %s135
      %p139 = pneg %p133
      %p140 = scmp.eq.s32.totalorder %s14, 1
      %p141 = por %p139, %p140
      %p142 = scmp.ne.s32.totalorder %s134, %s137
      %p143 = scmp.eq.s32.totalorder %s14, 0
      %p144 = por %p142, %p143
      %p145 = scmp.ne.s32.totalorder %s134, %s137
      %p146 = scmp.eq.s32.totalorder %s19, 1
      %p147 = por %p145, %p146
      %p148 = scmp.ne.s32.totalorder %s137, %s138
      %p149 = scmp.eq.s32.totalorder %s19, 0
      %p150 = por %p148, %p149
      %p151 = scmp.ne.s32.totalorder %s137, %s138
      %p152 = scmp.eq.s32.totalorder %s20, 1
      %p153 = por %p151, %p152
      %p155 = scmp.ne.s32.totalorder %s138, %s154
      %p156 = scmp.eq.s32.totalorder %s20, 0
      %p157 = por %p155, %p156
      %p158 = scmp.le.s32.totalorder 1, %s14
      %p159 = scmp.lt.s32.totalorder %s14, 3
      %p160 = pnand %p158, %p159
      %p161 = pneg %p160
      // Predicated region
      $region9: #{tpu_custom_call.1} parent=5 // pred_check
        _
      $region10: #{tpu_custom_call.1} parent=5 // pred_check_branch
        %163 = sbr.rel (%p160) target = $region12
      $region11: #{tpu_custom_call.1} parent=5 // pred_region
        %s164 = ssub.s32 %s14, 1
        // Predicated region
        $region13: #{tpu_custom_call.1} parent=11 // pred_check
          %p165 = pneg %p61
        $region14: #{tpu_custom_call.1} parent=11 // pred_check_branch
          %167 = sbr.rel (%p165) target = $region16
        $region15: #{tpu_custom_call.1} parent=11 // pred_region
          _
        $region16: #{tpu_custom_call.1} parent=11 // pred_fallthru
          _
        // Predicated region
        $region17: #{tpu_custom_call.1} parent=11 // pred_check
          %p168 = pneg %p82
        $region18: #{tpu_custom_call.1} parent=11 // pred_check_branch
          %170 = sbr.rel (%p168) target = $region20
        $region19: #{tpu_custom_call.1} parent=11 // pred_region
          _
        $region20: #{tpu_custom_call.1} parent=11 // pred_fallthru
          _
        // Predicated region
        $region21: #{tpu_custom_call.1} parent=11 // pred_check
          %p171 = pneg %p103
        $region22: #{tpu_custom_call.1} parent=11 // pred_check_branch
          %173 = sbr.rel (%p171) target = $region24
        $region23: #{tpu_custom_call.1} parent=11 // pred_region
          _
        $region24: #{tpu_custom_call.1} parent=11 // pred_fallthru
          _
        // Predicated region
        $region25: #{tpu_custom_call.1} parent=11 // pred_check
          %p174 = pneg %p124
        $region26: #{tpu_custom_call.1} parent=11 // pred_check_branch
          %176 = sbr.rel (%p174) target = $region28
        $region27: #{tpu_custom_call.1} parent=11 // pred_region
          _
        $region28: #{tpu_custom_call.1} parent=11 // pred_fallthru
          _
      $region12: #{tpu_custom_call.1} parent=5 // pred_fallthru
        _
      %p177 = scmp.lt.s32.totalorder %s14, 2
      // Predicated region
      $region29: #{tpu_custom_call.1} parent=5 // pred_check
        %p178 = pneg %p177
      $region30: #{tpu_custom_call.1} parent=5 // pred_check_branch
        %180 = sbr.rel (%p178) target = $region32
      $region31: #{tpu_custom_call.1} parent=5 // pred_region
        // Predicated region
        $region33: #{tpu_custom_call.1} parent=31 // pred_check
          %p181 = pneg %p34
        $region34: #{tpu_custom_call.1} parent=31 // pred_check_branch
          %183 = sbr.rel (%p181) target = $region36
        $region35: #{tpu_custom_call.1} parent=31 // pred_region
          %s184 = smul.u32 2, %s14
          %p185 = scmp.lt.s32.totalorder %s184, 3
          %s186 = scalar_select %p185, %s184, 3
          %s187 = smul.addr %s186, 4
          %s188 = scalar_lea.vmem %s0, %s187
          %s189 = smul.u32 2, %s14
        $region36: #{tpu_custom_call.1} parent=31 // pred_fallthru
          _
      $region32: #{tpu_custom_call.1} parent=5 // pred_fallthru
        _
      %p190 = scmp.le.s32.totalorder 1, %s14
      %p191 = scmp.lt.s32.totalorder %s14, 3
      %p192 = pnand %p190, %p191
      %p193 = pneg %p192
      // Predicated region
      $region37: #{tpu_custom_call.1} parent=5 // pred_check
        _
      $region38: #{tpu_custom_call.1} parent=5 // pred_check_branch
        %195 = sbr.rel (%p192) target = $region40
      $region39: #{tpu_custom_call.1} parent=5 // pred_region
        %s196 = ssub.s32 %s14, 1
        %s197 = smul.u32 2, %s19
        %p198 = scmp.lt.s32.totalorder %s197, 3
        %s199 = scalar_select %p198, %s197, 3
        %s200 = smul.addr %s199, 4
        %s201 = scalar_lea.vmem %s0, %s200
        %p202 = pneg %p40
        %p203 = pneg %p37
        %p204 = pneg %p61
        %p205 = pneg %p58
        %p206 = pneg %p82
        %p207 = pneg %p79
        %p208 = pneg %p103
        %p209 = pneg %p100
        %p210 = pneg %p124
        %p211 = pneg %p121
        %p212 = pneg %p150
        %p213 = pneg %p147
        %s214 = sand.u32 %s137, 1
        %s215 = scalar_lea.sflag [#allocation3], %s214
        %s216 = sand.u32 %s137, 1
        %s217 = smul.addr %s216, 2
        %s218 = scalar_lea.vmem [#allocation2], %s217
        %s219 = smul.u32 2, %s19
        %p220 = scmp.lt.s32.totalorder %s219, 3
        %s221 = scalar_select %p220, %s219, 3
        %s222 = smul.addr %s221, 4
        %s223 = scalar_lea.vmem %s0, %s222
        %s224 = smul.u32 2, %s19
        %s225 = smul.u32 2, %s19
        %v226 = vlaneseq
        %v227 = vshrl.u32 %v226, 7
        %v228 = vadd.s32 %v227, 8
        %v229 = vadd.s32 %v227, 16
        %v230 = vadd.s32 %v227, 24
        %v231 = vld [vmem:[%s223] ss:$4 sm:$0x3]
        %v232 = vlaneseq
        %v233 = vshrl.u32 %v232, 7
        %v234 = vsub.s32 0, %v233
        %v235 = vrot.slane %v231, %v234
        %v236 = vlaneseq
        %v237 = vshrl.u32 %v236, 7
        %v238 = vsub.s32 1, %v237
        %v239 = vrot.slane %v231, %v238
        %vm240 = vcmp.eq.s32.totalorder %v227, %v235
        %vm241 = vcmp.eq.s32.totalorder %v227, %v239
        %vm242 = vcmp.eq.s32.totalorder %v228, %v235
        %vm243 = vcmp.eq.s32.totalorder %v228, %v239
        %vm244 = vcmp.eq.s32.totalorder %v229, %v235
        %vm245 = vcmp.eq.s32.totalorder %v229, %v239
        %vm246 = vcmp.eq.s32.totalorder %v230, %v235
        %vm247 = vcmp.eq.s32.totalorder %v230, %v239
        %v248 = vsel %vm240, 1, 0
        %v249 = vsel %vm241, 1, 0
        %v250 = vsel %vm242, 1, 0
        %v251 = vsel %vm243, 1, 0
        %v252 = vsel %vm244, 1, 0
        %v253 = vsel %vm245, 1, 0
        %v254 = vsel %vm246, 1, 0
        %v255 = vsel %vm247, 1, 0
        %v256 = vcvt.s32.f32 %v248
        %v257 = vcvt.s32.f32 %v249
        %v258 = vcvt.s32.f32 %v250
        %v259 = vcvt.s32.f32 %v251
        %v260 = vcvt.s32.f32 %v252
        %v261 = vcvt.s32.f32 %v253
        %v262 = vcvt.s32.f32 %v254
        %v263 = vcvt.s32.f32 %v255
        %v264 = vadd.f32 %v256, 0.0
        %v265 = vadd.f32 %v257, 0.0
        %v266 = vadd.f32 %v258, 0.0
        %v267 = vadd.f32 %v259, 0.0
        %v268 = vadd.f32 %v260, 0.0
        %v269 = vadd.f32 %v261, 0.0
        %v270 = vadd.f32 %v262, 0.0
        %v271 = vadd.f32 %v263, 0.0
        %s272 = scalar_lea.vmem %s223, 1
        %v273 = vld [vmem:[%s272] ss:$4 sm:$0x3]
        %v274 = vlaneseq
        %v275 = vshrl.u32 %v274, 7
        %v276 = vsub.s32 0, %v275
        %v277 = vrot.slane %v273, %v276
        %v278 = vlaneseq
        %v279 = vshrl.u32 %v278, 7
        %v280 = vsub.s32 1, %v279
        %v281 = vrot.slane %v273, %v280
        %vm282 = vcmp.eq.s32.totalorder %v227, %v277
        %vm283 = vcmp.eq.s32.totalorder %v227, %v281
        %vm284 = vcmp.eq.s32.totalorder %v228, %v277
        %vm285 = vcmp.eq.s32.totalorder %v228, %v281
        %vm286 = vcmp.eq.s32.totalorder %v229, %v277
        %vm287 = vcmp.eq.s32.totalorder %v229, %v281
        %vm288 = vcmp.eq.s32.totalorder %v230, %v277
        %vm289 = vcmp.eq.s32.totalorder %v230, %v281
        %v290 = vsel %vm282, 1, 0
        %v291 = vsel %vm283, 1, 0
        %v292 = vsel %vm284, 1, 0
        %v293 = vsel %vm285, 1, 0
        %v294 = vsel %vm286, 1, 0
        %v295 = vsel %vm287, 1, 0
        %v296 = vsel %vm288, 1, 0
        %v297 = vsel %vm289, 1, 0
        %v298 = vcvt.s32.f32 %v290
        %v299 = vcvt.s32.f32 %v291
        %v300 = vcvt.s32.f32 %v292
        %v301 = vcvt.s32.f32 %v293
        %v302 = vcvt.s32.f32 %v294
        %v303 = vcvt.s32.f32 %v295
        %v304 = vcvt.s32.f32 %v296
        %v305 = vcvt.s32.f32 %v297
        %v306 = vadd.f32 %v264, %v298
        %v307 = vadd.f32 %v265, %v299
        %v308 = vadd.f32 %v266, %v300
        %v309 = vadd.f32 %v267, %v301
        %v310 = vadd.f32 %v268, %v302
        %v311 = vadd.f32 %v269, %v303
        %v312 = vadd.f32 %v270, %v304
        %v313 = vadd.f32 %v271, %v305
        %s314 = scalar_lea.vmem %s223, 2
        %v315 = vld [vmem:[%s314] ss:$4 sm:$0x3]
        %v316 = vlaneseq
        %v317 = vshrl.u32 %v316, 7
        %v318 = vsub.s32 0, %v317
        %v319 = vrot.slane %v315, %v318
        %v320 = vlaneseq
        %v321 = vshrl.u32 %v320, 7
        %v322 = vsub.s32 1, %v321
        %v323 = vrot.slane %v315, %v322
        %vm324 = vcmp.eq.s32.totalorder %v227, %v319
        %vm325 = vcmp.eq.s32.totalorder %v227, %v323
        %vm326 = vcmp.eq.s32.totalorder %v228, %v319
        %vm327 = vcmp.eq.s32.totalorder %v228, %v323
        %vm328 = vcmp.eq.s32.totalorder %v229, %v319
        %vm329 = vcmp.eq.s32.totalorder %v229, %v323
        %vm330 = vcmp.eq.s32.totalorder %v230, %v319
        %vm331 = vcmp.eq.s32.totalorder %v230, %v323
        %v332 = vsel %vm324, 1, 0
        %v333 = vsel %vm325, 1, 0
        %v334 = vsel %vm326, 1, 0
        %v335 = vsel %vm327, 1, 0
        %v336 = vsel %vm328, 1, 0
        %v337 = vsel %vm329, 1, 0
        %v338 = vsel %vm330, 1, 0
        %v339 = vsel %vm331, 1, 0
        %v340 = vcvt.s32.f32 %v332
        %v341 = vcvt.s32.f32 %v333
        %v342 = vcvt.s32.f32 %v334
        %v343 = vcvt.s32.f32 %v335
        %v344 = vcvt.s32.f32 %v336
        %v345 = vcvt.s32.f32 %v337
        %v346 = vcvt.s32.f32 %v338
        %v347 = vcvt.s32.f32 %v339
        %v348 = vadd.f32 %v306, %v340
        %v349 = vadd.f32 %v307, %v341
        %v350 = vadd.f32 %v308, %v342
        %v351 = vadd.f32 %v309, %v343
        %v352 = vadd.f32 %v310, %v344
        %v353 = vadd.f32 %v311, %v345
        %v354 = vadd.f32 %v312, %v346
        %v355 = vadd.f32 %v313, %v347
        %s356 = scalar_lea.vmem %s223, 3
        %v357 = vld [vmem:[%s356] ss:$4 sm:$0x3]
        %v358 = vlaneseq
        %v359 = vshrl.u32 %v358, 7
        %v360 = vsub.s32 0, %v359
        %v361 = vrot.slane %v357, %v360
        %v362 = vlaneseq
        %v363 = vshrl.u32 %v362, 7
        %v364 = vsub.s32 1, %v363
        %v365 = vrot.slane %v357, %v364
        %vm366 = vcmp.eq.s32.totalorder %v227, %v361
        %vm367 = vcmp.eq.s32.totalorder %v227, %v365
        %vm368 = vcmp.eq.s32.totalorder %v228, %v361
        %vm369 = vcmp.eq.s32.totalorder %v228, %v365
        %vm370 = vcmp.eq.s32.totalorder %v229, %v361
        %vm371 = vcmp.eq.s32.totalorder %v229, %v365
        %vm372 = vcmp.eq.s32.totalorder %v230, %v361
        %vm373 = vcmp.eq.s32.totalorder %v230, %v365
        %v374 = vsel %vm366, 1, 0
        %v375 = vsel %vm367, 1, 0
        %v376 = vsel %vm368, 1, 0
        %v377 = vsel %vm369, 1, 0
        %v378 = vsel %vm370, 1, 0
        %v379 = vsel %vm371, 1, 0
        %v380 = vsel %vm372, 1, 0
        %v381 = vsel %vm373, 1, 0
        %v382 = vcvt.s32.f32 %v374
        %v383 = vcvt.s32.f32 %v375
        %v384 = vcvt.s32.f32 %v376
        %v385 = vcvt.s32.f32 %v377
        %v386 = vcvt.s32.f32 %v378
        %v387 = vcvt.s32.f32 %v379
        %v388 = vcvt.s32.f32 %v380
        %v389 = vcvt.s32.f32 %v381
        %v390 = vadd.f32 %v348, %v382
        %v391 = vadd.f32 %v349, %v383
        %v392 = vadd.f32 %v350, %v384
        %v393 = vadd.f32 %v351, %v385
        %v394 = vadd.f32 %v352, %v386
        %v395 = vadd.f32 %v353, %v387
        %v396 = vadd.f32 %v354, %v388
        %v397 = vadd.f32 %v355, %v389
        %v398 = vld [vmem:[%s1] sm:$0xff]
        %v399 = vld [vmem:[%s1 + $0x8] sm:$0xff]
        %v400 = vld [vmem:[%s1 + $0x10] sm:$0xff]
        %v401 = vld [vmem:[%s1 + $0x18] sm:$0xff]
        %v402 = vld [vmem:[%s1 + $0x20] sm:$0x1]
        %vm403 = vcmask 211968
        %v405 = vsel %vm403, %v398, 0
        %v408 = vsel %vm403, %v399, 0
        %v411 = vsel %vm403, %v400, 0
        %v414 = vsel %vm403, %v401, 0
        %v417 = vsel %vm403, %v402, 0
        %vm419 = vcmask 1041408
        %v421 = vsel %vm419, %v396, 0
        %v424 = vsel %vm419, %v397, 0
        %426 = vmatprep.subr.mxu0 0.0
        %427 = vmatpush1.msra.mxu0 0.0
        %428 = vmatprep.subr.mxu0 0.0
        %429 = vmatpush1.msra.mxu0 0.0
        %430 = vmatprep.subr.mxu0 0.0
        %431 = vmatpush1.msra.mxu0 0.0
        %432 = vmatprep.subr.mxu0 0.0
        %433 = vmatpush1.msra.mxu0 0.0
        %434 = vmatprep.subr.mxu0 0.0
        %435 = vmatpush1.msra.mxu0 0.0
        %436 = vmatprep.subr.mxu0 0.0
        %437 = vmatpush1.msra.mxu0 0.0
        %438 = vmatprep.subr.mxu0 0.0
        %439 = vmatpush1.msra.mxu0 0.0
        %440 = vmatprep.subr.mxu0 0.0
        %441 = vmatpush1.msra.mxu0 0.0
        %442 = vmatprep.subr.mxu0 0.0
        %443 = vmatpush1.msra.mxu0 0.0
        %444 = vmatprep.subr.mxu0 0.0
        %445 = vmatpush1.msra.mxu0 0.0
        %446 = vmatprep.subr.mxu0 0.0
        %447 = vmatpush1.msra.mxu0 0.0
        %448 = vmatprep.subr.mxu0 0.0
        %449 = vmatpush1.msra.mxu0 0.0
        %450 = vmatprep.subr.mxu0 %v424
        %451 = vmatpush1.msra.mxu0 %v421
        %452 = vmatprep.subr.mxu0 %v395
        %453 = vmatpush1.msra.mxu0 %v394
        %454 = vmatprep.subr.mxu0 %v393
        %455 = vmatpush1.msra.mxu0 %v392
        %456 = vmatprep.subr.mxu0 %v391
        %457 = vmatpush1.msra.mxu0 %v390
        %458 = vmatprep.subr.mxu0 0.0
        %459 = vmatpush2.msra.mxu0 0.0
        %460 = vmatprep.subr.mxu0 0.0
        %461 = vmatpush2.msra.mxu0 0.0
        %462 = vmatprep.subr.mxu0 0.0
        %463 = vmatpush2.msra.mxu0 0.0
        %464 = vmatprep.subr.mxu0 0.0
        %465 = vmatpush2.msra.mxu0 0.0
        %466 = vmatprep.subr.mxu0 0.0
        %467 = vmatpush2.msra.mxu0 0.0
        %468 = vmatprep.subr.mxu0 0.0
        %469 = vmatpush2.msra.mxu0 0.0
        %470 = vmatprep.subr.mxu0 0.0
        %471 = vmatpush2.msra.mxu0 0.0
        %472 = vmatprep.subr.mxu0 0.0
        %473 = vmatpush2.msra.mxu0 0.0
        %474 = vmatprep.subr.mxu0 0.0
        %475 = vmatpush2.msra.mxu0 0.0
        %476 = vmatprep.subr.mxu0 0.0
        %477 = vmatpush2.msra.mxu0 0.0
        %478 = vmatprep.subr.mxu0 0.0
        %479 = vmatpush2.msra.mxu0 0.0
        %480 = vmatprep.subr.mxu0 0.0
        %481 = vmatpush2.msra.mxu0 0.0
        %482 = vmatprep.subr.mxu0 0.0
        %483 = vmatpush2.msra.mxu0 0.0
        %484 = vmatprep.subr.mxu0 0.0
        %485 = vmatpush2.msra.mxu0 0.0
        %486 = vmatprep.subr.mxu0 0.0
        %487 = vmatpush2.msra.mxu0 0.0
        %488 = vmatprep.subr.mxu0 0.0
        %489 = vmatpush2.msra.mxu0 0.0
        %490 = vmatprep.mubr.f32.mxu0 0.0
        %491 = vmatmul.mubr.f32.gmra.mxu0 %v405
        %v492 = vpop.f32.mrf.mxu0
        %v493 = vadd.f32 0.0, %v492
        %v494 = vpop.f32.mrf.mxu0
        %v495 = vadd.f32 0.0, %v494
        %496 = vmatprep.mubr.f32.mxu0 0.0
        %497 = vmatmul.mubr.f32.gmra.mxu0 %v408
        %v498 = vpop.f32.mrf.mxu0
        %v499 = vadd.f32 0.0, %v498
        %v500 = vpop.f32.mrf.mxu0
        %v501 = vadd.f32 0.0, %v500
        %502 = vmatprep.mubr.f32.mxu0 0.0
        %503 = vmatmul.mubr.f32.gmra.mxu0 %v411
        %v504 = vpop.f32.mrf.mxu0
        %v505 = vadd.f32 0.0, %v504
        %v506 = vpop.f32.mrf.mxu0
        %v507 = vadd.f32 0.0, %v506
        %508 = vmatprep.mubr.f32.mxu0 0.0
        %509 = vmatmul.mubr.f32.gmra.mxu0 %v414
        %v510 = vpop.f32.mrf.mxu0
        %v511 = vadd.f32 0.0, %v510
        %v512 = vpop.f32.mrf.mxu0
        %v513 = vadd.f32 0.0, %v512
        %514 = vmatprep.mubr.f32.mxu0 0.0
        %515 = vmatmul.mubr.f32.gmra.mxu0 %v417
        %v516 = vpop.f32.mrf.mxu0
        %v517 = vadd.f32 0.0, %v516
        %v518 = vpop.f32.mrf.mxu0
        %v519 = vadd.f32 0.0, %v518
        %520 = vdwg.mxu0
        %v521 = vld [vmem:[%s4] sm:$0xff]
        %v522 = vld [vmem:[%s4 + $0x8] sm:$0xff]
        %v523 = vld [vmem:[%s4 + $0x10] sm:$0xff]
        %v524 = vld [vmem:[%s4 + $0x18] sm:$0xff]
        %v525 = vld [vmem:[%s4 + $0x20] sm:$0xff]
        %v526 = vld [vmem:[%s4 + $0x28] sm:$0xff]
        %v527 = vld [vmem:[%s4 + $0x30] sm:$0xff]
        %v528 = vld [vmem:[%s4 + $0x38] sm:$0xff]
        %v529 = vld [vmem:[%s4 + $0x40] sm:$0x1]
        %v530 = vld [vmem:[%s2] sm:$0xff]
        %v531 = vld [vmem:[%s2 + $0x8] sm:$0xff]
        %v532 = vld [vmem:[%s2 + $0x10] sm:$0xff]
        %v533 = vld [vmem:[%s2 + $0x18] sm:$0xff]
        %535 = vset.pattern.permute.xlu0 0
        %536 = vperm.xlu0 %535, %v521
        %v537 = vpop.permute.xlu0 %536
        %540 = vset.pattern.permute.xlu0 0
        %541 = vperm.xlu0 %540, %v522
        %v542 = vpop.permute.xlu0 %541
        %545 = vset.pattern.permute.xlu0 0
        %546 = vperm.xlu0 %545, %v523
        %v547 = vpop.permute.xlu0 %546
        %550 = vset.pattern.permute.xlu0 0
        %551 = vperm.xlu0 %550, %v524
        %v552 = vpop.permute.xlu0 %551
        %vm554 = vcmask 261120
        %v556 = vsel %vm554, %v530, 0
        %v559 = vsel %vm554, %v531, 0
        %v562 = vsel %vm554, %v532, 0
        %v565 = vsel %vm554, %v533, 0
        %567 = vmatprep.subr.mxu0 0.0
        %568 = vmatpush1.msra.mxu0 0.0
        %569 = vmatprep.subr.mxu0 0.0
        %570 = vmatpush1.msra.mxu0 0.0
        %571 = vmatprep.subr.mxu0 0.0
        %572 = vmatpush1.msra.mxu0 0.0
        %573 = vmatprep.subr.mxu0 0.0
        %574 = vmatpush1.msra.mxu0 0.0
        %575 = vmatprep.subr.mxu0 0.0
        %576 = vmatpush1.msra.mxu0 0.0
        %577 = vmatprep.subr.mxu0 0.0
        %578 = vmatpush1.msra.mxu0 0.0
        %579 = vmatprep.subr.mxu0 0.0
        %580 = vmatpush1.msra.mxu0 0.0
        %581 = vmatprep.subr.mxu0 0.0
        %582 = vmatpush1.msra.mxu0 0.0
        %583 = vmatprep.subr.mxu0 0.0
        %584 = vmatpush1.msra.mxu0 0.0
        %585 = vmatprep.subr.mxu0 0.0
        %586 = vmatpush1.msra.mxu0 0.0
        %587 = vmatprep.subr.mxu0 0.0
        %588 = vmatpush1.msra.mxu0 0.0
        %589 = vmatprep.subr.mxu0 0.0
        %590 = vmatpush1.msra.mxu0 0.0
        %591 = vmatprep.subr.mxu0 %v513
        %592 = vmatpush1.msra.mxu0 %v511
        %593 = vmatprep.subr.mxu0 %v507
        %594 = vmatpush1.msra.mxu0 %v505
        %595 = vmatprep.subr.mxu0 %v501
        %596 = vmatpush1.msra.mxu0 %v499
        %597 = vmatprep.subr.mxu0 %v495
        %598 = vmatpush1.msra.mxu0 %v493
        %599 = vmatprep.subr.mxu0 0.0
        %600 = vmatpush2.msra.mxu0 0.0
        %601 = vmatprep.subr.mxu0 0.0
        %602 = vmatpush2.msra.mxu0 0.0
        %603 = vmatprep.subr.mxu0 0.0
        %604 = vmatpush2.msra.mxu0 0.0
        %605 = vmatprep.subr.mxu0 0.0
        %606 = vmatpush2.msra.mxu0 0.0
        %607 = vmatprep.subr.mxu0 0.0
        %608 = vmatpush2.msra.mxu0 0.0
        %609 = vmatprep.subr.mxu0 0.0
        %610 = vmatpush2.msra.mxu0 0.0
        %611 = vmatprep.subr.mxu0 0.0
        %612 = vmatpush2.msra.mxu0 0.0
        %613 = vmatprep.subr.mxu0 0.0
        %614 = vmatpush2.msra.mxu0 0.0
        %615 = vmatprep.subr.mxu0 0.0
        %616 = vmatpush2.msra.mxu0 0.0
        %617 = vmatprep.subr.mxu0 0.0
        %618 = vmatpush2.msra.mxu0 0.0
        %619 = vmatprep.subr.mxu0 0.0
        %620 = vmatpush2.msra.mxu0 0.0
        %621 = vmatprep.subr.mxu0 0.0
        %622 = vmatpush2.msra.mxu0 0.0
        %623 = vmatprep.subr.mxu0 0.0
        %624 = vmatpush2.msra.mxu0 0.0
        %625 = vmatprep.subr.mxu0 0.0
        %626 = vmatpush2.msra.mxu0 0.0
        %627 = vmatprep.subr.mxu0 0.0
        %628 = vmatpush2.msra.mxu0 0.0
        %629 = vmatprep.subr.mxu0 0.0
        %630 = vmatpush2.msra.mxu0 0.0
        %631 = vmatprep.mubr.f32.mxu0 0.0
        %632 = vmatmul.mubr.f32.gmra.mxu0 %v556
        %v633 = vpop.f32.mrf.mxu0
        %v634 = vadd.f32 %v537, %v633
        %v635 = vpop.f32.mrf.mxu0
        %v636 = vadd.f32 %v537, %v635
        %637 = vmatprep.mubr.f32.mxu0 0.0
        %638 = vmatmul.mubr.f32.gmra.mxu0 %v559
        %v639 = vpop.f32.mrf.mxu0
        %v640 = vadd.f32 %v542, %v639
        %v641 = vpop.f32.mrf.mxu0
        %v642 = vadd.f32 %v542, %v641
        %643 = vmatprep.mubr.f32.mxu0 0.0
        %644 = vmatmul.mubr.f32.gmra.mxu0 %v562
        %v645 = vpop.f32.mrf.mxu0
        %v646 = vadd.f32 %v547, %v645
        %v647 = vpop.f32.mrf.mxu0
        %v648 = vadd.f32 %v547, %v647
        %649 = vmatprep.mubr.f32.mxu0 0.0
        %650 = vmatmul.mubr.f32.gmra.mxu0 %v565
        %v651 = vpop.f32.mrf.mxu0
        %v652 = vadd.f32 %v552, %v651
        %v653 = vpop.f32.mrf.mxu0
        %v654 = vadd.f32 %v552, %v653
        %655 = vdwg.mxu0
        %v656 = vmax.f32 %v634, 0.0
        %v657 = vmax.f32 %v636, 0.0
        %v658 = vmax.f32 %v640, 0.0
        %v659 = vmax.f32 %v642, 0.0
        %v660 = vmax.f32 %v646, 0.0
        %v661 = vmax.f32 %v648, 0.0
        %v662 = vmax.f32 %v652, 0.0
        %v663 = vmax.f32 %v654, 0.0
        %v664 = vld [vmem:[%s3] sm:$0xff]
        %v665 = vld [vmem:[%s3 + $0x8] sm:$0xff]
        %667 = vset.pattern.permute.xlu0 0
        %668 = vperm.xlu0 %667, %v525
        %v669 = vpop.permute.xlu0 %668
        %672 = vset.pattern.permute.xlu0 0
        %673 = vperm.xlu0 %672, %v526
        %v674 = vpop.permute.xlu0 %673
        %v677 = vsel %vm554, %v664, 0
        %v680 = vsel %vm554, %v665, 0
        %682 = vmatprep.subr.mxu0 0.0
        %683 = vmatpush1.msra.mxu0 0.0
        %684 = vmatprep.subr.mxu0 0.0
        %685 = vmatpush1.msra.mxu0 0.0
        %686 = vmatprep.subr.mxu0 0.0
        %687 = vmatpush1.msra.mxu0 0.0
        %688 = vmatprep.subr.mxu0 0.0
        %689 = vmatpush1.msra.mxu0 0.0
        %690 = vmatprep.subr.mxu0 0.0
        %691 = vmatpush1.msra.mxu0 0.0
        %692 = vmatprep.subr.mxu0 0.0
        %693 = vmatpush1.msra.mxu0 0.0
        %694 = vmatprep.subr.mxu0 0.0
        %695 = vmatpush1.msra.mxu0 0.0
        %696 = vmatprep.subr.mxu0 0.0
        %697 = vmatpush1.msra.mxu0 0.0
        %698 = vmatprep.subr.mxu0 0.0
        %699 = vmatpush1.msra.mxu0 0.0
        %700 = vmatprep.subr.mxu0 0.0
        %701 = vmatpush1.msra.mxu0 0.0
        %702 = vmatprep.subr.mxu0 0.0
        %703 = vmatpush1.msra.mxu0 0.0
        %704 = vmatprep.subr.mxu0 0.0
        %705 = vmatpush1.msra.mxu0 0.0
        %706 = vmatprep.subr.mxu0 %v663
        %707 = vmatpush1.msra.mxu0 %v662
        %708 = vmatprep.subr.mxu0 %v661
        %709 = vmatpush1.msra.mxu0 %v660
        %710 = vmatprep.subr.mxu0 %v659
        %711 = vmatpush1.msra.mxu0 %v658
        %712 = vmatprep.subr.mxu0 %v657
        %713 = vmatpush1.msra.mxu0 %v656
        %714 = vmatprep.subr.mxu0 0.0
        %715 = vmatpush2.msra.mxu0 0.0
        %716 = vmatprep.subr.mxu0 0.0
        %717 = vmatpush2.msra.mxu0 0.0
        %718 = vmatprep.subr.mxu0 0.0
        %719 = vmatpush2.msra.mxu0 0.0
        %720 = vmatprep.subr.mxu0 0.0
        %721 = vmatpush2.msra.mxu0 0.0
        %722 = vmatprep.subr.mxu0 0.0
        %723 = vmatpush2.msra.mxu0 0.0
        %724 = vmatprep.subr.mxu0 0.0
        %725 = vmatpush2.msra.mxu0 0.0
        %726 = vmatprep.subr.mxu0 0.0
        %727 = vmatpush2.msra.mxu0 0.0
        %728 = vmatprep.subr.mxu0 0.0
        %729 = vmatpush2.msra.mxu0 0.0
        %730 = vmatprep.subr.mxu0 0.0
        %731 = vmatpush2.msra.mxu0 0.0
        %732 = vmatprep.subr.mxu0 0.0
        %733 = vmatpush2.msra.mxu0 0.0
        %734 = vmatprep.subr.mxu0 0.0
        %735 = vmatpush2.msra.mxu0 0.0
        %736 = vmatprep.subr.mxu0 0.0
        %737 = vmatpush2.msra.mxu0 0.0
        %738 = vmatprep.subr.mxu0 0.0
        %739 = vmatpush2.msra.mxu0 0.0
        %740 = vmatprep.subr.mxu0 0.0
        %741 = vmatpush2.msra.mxu0 0.0
        %742 = vmatprep.subr.mxu0 0.0
        %743 = vmatpush2.msra.mxu0 0.0
        %744 = vmatprep.subr.mxu0 0.0
        %745 = vmatpush2.msra.mxu0 0.0
        %746 = vmatprep.mubr.f32.mxu0 0.0
        %747 = vmatmul.mubr.f32.gmra.mxu0 %v677
        %v748 = vpop.f32.mrf.mxu0
        %v749 = vadd.f32 %v669, %v748
        %v750 = vpop.f32.mrf.mxu0
        %v751 = vadd.f32 %v669, %v750
        %752 = vmatprep.mubr.f32.mxu0 0.0
        %753 = vmatmul.mubr.f32.gmra.mxu0 %v680
        %v754 = vpop.f32.mrf.mxu0
        %v755 = vadd.f32 %v674, %v754
        %v756 = vpop.f32.mrf.mxu0
        %v757 = vadd.f32 %v674, %v756
        %758 = vdwg.mxu0
        %v759 = vmax.f32 %v749, 0.0
        %v760 = vmax.f32 %v751, 0.0
        %v761 = vmax.f32 %v755, 0.0
        %v762 = vmax.f32 %v757, 0.0
        %764 = vset.pattern.permute.xlu0 0
        %765 = vperm.xlu0 %764, %v527
        %v766 = vpop.permute.xlu0 %765
        %769 = vset.pattern.permute.xlu0 0
        %770 = vperm.xlu0 %769, %v528
        %v771 = vpop.permute.xlu0 %770
        %v773 = vmul.f32 %v759, %v766
        %v774 = vmul.f32 %v760, %v766
        %v775 = vmul.f32 %v761, %v771
        %v776 = vmul.f32 %v762, %v771
        %v777 = vadd.f32 %v773, %v775
        %v778 = vrot.slane %v777, 4
        %v779 = vadd.f32 %v777, %v778
        %v780 = vrot.slane %v779, 2
        %v781 = vadd.f32 %v779, %v780
        %v782 = vrot.slane %v781, 1
        %v783 = vadd.f32 %v781, %v782
        %v784 = vadd.f32 %v774, %v776
        %v785 = vrot.slane %v784, 4
        %v786 = vadd.f32 %v784, %v785
        %v787 = vrot.slane %v786, 2
        %v788 = vadd.f32 %v786, %v787
        %v789 = vrot.slane %v788, 1
        %v790 = vadd.f32 %v788, %v789
        %v791 = vadd.f32 %v783, %v517
        %v792 = vadd.f32 %v790, %v519
        %794 = vset.pattern.permute.xlu0 0
        %795 = vperm.xlu0 %794, %v529
        %v796 = vpop.permute.xlu0 %795
        %v798 = vadd.f32 %v791, %v796
        %v799 = vadd.f32 %v792, %v796
        %v800 = vxor.u32 %v798, 2147483648
        %v801 = vxor.u32 %v799, 2147483648
        %v802 = vmul.f32 %v800, 1.442695
        %v803 = vpow.pop %v802
        %v804 = vmul.f32 %v801, 1.442695
        %v805 = vpow.pop %v804
        %v806 = vadd.f32 %v803, 1.0
        %v807 = vadd.f32 %v805, 1.0
        %v808 = vrcp.pop %v806
        %v809 = vmul.f32 1.0, %v808
        %v810 = vrcp.pop %v807
        %v811 = vmul.f32 1.0, %v810
        %v814 = vcombine.low %v809, %v811
        %v816 = vunpack.c.l.s4 1966171168
        %v817 = vunpack.c.0.s8 %v816
        %v818 = vlaneseq
        %v819 = vshrl.u32 %v818, 7
        %v820 = vsub.s32 %v817, %v819
        %v821 = vrot.slane %v814, %v820
        %v823 = vunpack.c.l.s4 1966171168
        %v824 = vunpack.c.0.s8 %v823
        %v825 = vlaneseq
        %v826 = vshrl.u32 %v825, 7
        %v827 = vsub.s32 %v824, %v826
        %v828 = vrot.slane %v821, %v827
        %v830 = vlaneseq
        %vm831 = vcmp.ge.s32.totalorder %v830, 0
        %vm832 = vcmp.lt.s32.totalorder %v830, 256
        %vm833 = vmand %vm831, %vm832
        %834 = vst.msk [vmem:[%s218] sm:$0x3] %vm833, %v828
        %s835 = sand.u32 %s137, 1
        %s836 = scalar_lea.sflag [#allocation3], %s835
        %s837 = sand.u32 %s137, 1
        %s838 = smul.addr %s837, 2
        %s839 = scalar_lea.vmem [#allocation2], %s838
        // Predicated region
        $region41: #{tpu_custom_call.1} parent=39 // pred_check
          %p840 = pneg %p147
        $region42: #{tpu_custom_call.1} parent=39 // pred_check_branch
          %842 = sbr.rel (%p840) target = $region44
        $region43: #{tpu_custom_call.1} parent=39 // pred_region
          %s843 = smul.u32 2, %s19
          %s845 = ssub.s32 32, 32
          %846 = vsyncadd %s836, %s845
          %s847 = smul.addr %s843, 16
          %s848 = scalar_lea.hbm %s5, %s847
          %s850 = sshll.u32 %s839, 4
          %s851 = int_to_ptr.vmem [resolvable:$true] %s850
          %853 = dma.vmem_to_hbm [thread:$0]  %s851, 32, %s848, %s836
        $region44: #{tpu_custom_call.1} parent=39 // pred_fallthru
          _
      $region40: #{tpu_custom_call.1} parent=5 // pred_fallthru
        _
      %p854 = scmp.le.s32.totalorder 2, %s14
      // Predicated region
      $region45: #{tpu_custom_call.1} parent=5 // pred_check
        %p855 = pneg %p854
      $region46: #{tpu_custom_call.1} parent=5 // pred_check_branch
        %857 = sbr.rel (%p855) target = $region48
      $region47: #{tpu_custom_call.1} parent=5 // pred_region
        %s858 = ssub.s32 %s14, 2
        // Predicated region
        $region49: #{tpu_custom_call.1} parent=47 // pred_check
          %p859 = pneg %p153
        $region50: #{tpu_custom_call.1} parent=47 // pred_check_branch
          %861 = sbr.rel (%p859) target = $region52
        $region51: #{tpu_custom_call.1} parent=47 // pred_region
          %s862 = sand.u32 %s138, 1
          %s863 = scalar_lea.sflag [#allocation3], %s862
          %s864 = sand.u32 %s138, 1
          %s865 = smul.addr %s864, 2
          %s866 = scalar_lea.vmem [#allocation2], %s865
          %867 = dma.done %s863, 32
        $region52: #{tpu_custom_call.1} parent=47 // pred_fallthru
          _
      $region48: #{tpu_custom_call.1} parent=5 // pred_fallthru
        _
    $region6: #{tpu_custom_call.1} parent=1 // loop_footer
      %s18 = sadd.s32 1, %s14
    $region7: #{tpu_custom_call.1} parent=1 // loop_footer_branch
      %13 = sbr.rel target = $region3
    $region8: #{tpu_custom_call.1} parent=1 // loop_exit
      _
    %868 = vsyncpa [#allocation3], 1
    %s869 = scalar_lea.sflag [#allocation3], 1
    %870 = vsyncpa %s869, 1

</llo_original>
